<compile_context>
chip_gen: v7x
topology: tpu7x:2x2x1
jax: 0.10.0
libtpu: 0.0.40
codegen_flags: <defaults>
</compile_context>

<pallas_src>
import functools

import jax
import jax.numpy as jnp
import numpy as np
from jax import lax
from jax.experimental import pallas as pl
from jax.experimental.pallas import tpu as pltpu


def _dino_loss_kernel(temp_ref, student_ref, teacher_ref, center_ref,
                      loss_ref, center_sum_ref, *, ncrops, student_temp):
    # Hoisted scalar reciprocals -> tensor multiplies instead of divides.
    inv_temp = jnp.float32(1.0) / temp_ref[0, 0]
    inv_student_temp = jnp.float32(1.0 / student_temp)

    center = center_ref[...].astype(jnp.float32)               # (1, D)

    # ---- teacher: softmax((teacher - center) / temp, axis=-1), one global
    # crop at a time so only ~one crop of f32 temporaries is live.  The raw
    # column-sum needed for the center EMA is folded into the same pass.
    def teacher_block(i):
        t_raw = teacher_ref[i].astype(jnp.float32)             # (TB, D)
        cs = jnp.sum(t_raw, axis=0, keepdims=True)             # (1, D)
        t = (t_raw - center) * inv_temp
        t = t - jnp.max(t, axis=-1, keepdims=True)
        e = jnp.exp(t)
        q = e * pl.reciprocal(jnp.sum(e, axis=-1, keepdims=True),
                              approx=False)                    # (TB, D)
        return q, cs

    q0, cs0 = teacher_block(0)
    q1, cs1 = teacher_block(1)
    center_sum_ref[...] = (cs0 + cs1).reshape(center_sum_ref.shape)

    # ---- student crops, one at a time.  Since sum_d(q) == 1:
    #   sum_d(-q * log_softmax(s)) = lse(s_shift) - dot(q, s_shift)
    # so the (TB, D) log-softmax is never materialized; each crop contributes
    # only a (TB, 1) per-row term (XLU reduces + one D-wide multiply).
    def crop_term(s_rows, q, lse_weight):
        s = s_rows.astype(jnp.float32) * inv_student_temp      # (TB, D)
        s_shift = s - jnp.max(s, axis=-1, keepdims=True)
        lse = jnp.log(jnp.sum(jnp.exp(s_shift), axis=-1, keepdims=True))
        dot = jnp.sum(q * s_shift, axis=-1, keepdims=True)
        return dot - lse_weight * lse                          # (TB, 1)

    # Crop 0 pairs only with teacher crop 1; crop 1 only with teacher crop 0.
    per_row = crop_term(student_ref[0], q1, jnp.float32(1.0))
    per_row = per_row + crop_term(student_ref[1], q0, jnp.float32(1.0))

    # Crops >= 2 pair with both teacher crops -> one dot against (q0 + q1),
    # streamed with a fori_loop so live ranges stay bounded to one crop.
    if ncrops > 2:
        q01 = q0 + q1

        def body(v, acc):
            return acc + crop_term(student_ref[v], q01, jnp.float32(2.0))

        per_row = lax.fori_loop(2, ncrops, body, per_row)

    # One scalar per tile, written as a lane-dense slab; the global
    # 1/(batch * n_terms) normalization is applied once in the wrapper.
    tile_loss = -jnp.sum(per_row)
    loss_ref[...] = jnp.full(loss_ref.shape, tile_loss, dtype=jnp.float32)


def _vmem_config():
    """(vmem_limit_bytes, tile_budget_bytes), sized per TPU generation."""
    try:
        cap = pltpu.get_tpu_info().vmem_capacity_bytes
    except Exception:
        cap = 64 * 1024 * 1024                     # be v7x-conservative
    if cap >= 128 * 1024 * 1024:                   # v5e / v6e: 128 MiB VMEM
        return 96 * 1024 * 1024, 40 * 1024 * 1024
    # v7x: 64 MiB physical per TensorCore — keep double buffers well inside.
    return 32 * 1024 * 1024, 14 * 1024 * 1024


def _pick_tile_batch(batch, ncrops, out_dim, in_itemsize, budget_bytes):
    """Largest batch-row tile that divides `batch`, is sublane-aligned for the
    input dtype (8 rows f32, 16 bf16, 32 int8) or equal to the full batch, and
    keeps the double-buffered inputs + f32 working set inside `budget_bytes`.
    Prefers an even number of grid steps (2-TensorCore load balance on v7x)
    when that costs at most a 2x smaller tile.  Fails loudly if nothing fits
    (no silent spill-bound full-batch fallback)."""
    # Working-set model, bytes per batch row:
    #   double-buffered native-dtype inputs : 2 * (ncrops + 2) * D * itemsize
    #   resident f32 teacher softmax q0/q1/q01 : 3 * D * 4
    #   per-crop f32 temporaries (~4 live)     : 4 * D * 4
    per_row = (2 * (ncrops + 2) * in_itemsize + 7 * 4) * out_dim
    max_tb = budget_bytes // max(1, per_row)
    if max_tb < 1:
        # TODO(synk): add a D-tiled (online-softmax) grid axis for very large
        # heads (e.g. the production 65536-dim DINO head).
        raise ValueError(
            f"DINOLoss tile does not fit the VMEM budget: batch={batch}, "
            f"out_dim={out_dim}, ncrops={ncrops}, budget={budget_bytes}B")

    def candidates(align):
        cands = []
        tb = min(batch, max_tb)
        while tb >= 1:
            if batch % tb == 0 and (tb % align == 0 or tb == batch):
                cands.append(tb)
            tb -= 1
        return cands

    align = max(8, 32 // max(1, in_itemsize))
    cands = candidates(align)
    if not cands:
        cands = candidates(8)       # fall back to minimal (8,128) alignment
    if not cands:
        raise ValueError(
            f"No batch-row tile of {batch} rows fits the VMEM budget "
            f"({budget_bytes}B) for out_dim={out_dim}, ncrops={ncrops}; "
            f"add D-axis tiling for this configuration.")

    best = cands[0]
    for tb in cands:                # prefer an even grid-step count (>= 2 TCs)
        if (batch // tb) % 2 == 0 and tb * 2 >= best:
            return tb
    return best


def dino_loss(student_output, teacher_output, center, teacher_temp_epoch,
              *, ncrops, student_temp=0.1, center_momentum=0.9,
              tile_batch=None):
    """Returns (loss_scalar, new_center) — DINOLoss.forward + update_center."""
    n_student_rows, out_dim = student_output.shape
    n_teacher_rows = teacher_output.shape[0]
    assert ncrops >= 2
    assert n_student_rows % ncrops == 0
    batch = n_student_rows // ncrops
    # Standard DINO: exactly 2 global (teacher) crops — the kernel hard-codes
    # this, so fail loudly otherwise.
    assert n_teacher_rows == 2 * batch, "DINOLoss expects exactly 2 teacher crops"

    vmem_limit, tile_budget = _vmem_config()
    if tile_batch is None:
        tile_batch = _pick_tile_batch(
            batch, ncrops, out_dim,
            jnp.dtype(student_output.dtype).itemsize, tile_budget)
    assert batch % tile_batch == 0
    assert tile_batch % 8 == 0 or tile_batch == batch
    num_tiles = batch // tile_batch

    # Row-major views tiled along the batch axis (no data movement).
    student3 = student_output.reshape(ncrops, batch, out_dim)
    teacher3 = teacher_output.reshape(2, batch, out_dim)
    temp_arr = jnp.asarray(teacher_temp_epoch, jnp.float32).reshape(1, 1)

    kernel = functools.partial(_dino_loss_kernel, ncrops=ncrops,
                               student_temp=student_temp)

    partial_loss, partial_csum = pl.pallas_call(
        kernel,
        grid=(num_tiles,),
        in_specs=[
            pl.BlockSpec(memory_space=pltpu.SMEM),                         # temp
            pl.BlockSpec((ncrops, tile_batch, out_dim), lambda i: (0, i, 0)),
            pl.BlockSpec((2, tile_batch, out_dim), lambda i: (0, i, 0)),
            pl.BlockSpec((1, out_dim), lambda i: (0, 0)),                  # center
        ],
        out_specs=(
            pl.BlockSpec((1, 1, 128), lambda i: (i, 0, 0)),      # per-tile loss
            pl.BlockSpec((1, 1, out_dim), lambda i: (i, 0, 0)),  # per-tile csum
        ),
        out_shape=(
            jax.ShapeDtypeStruct((num_tiles, 1, 128), jnp.float32),
            jax.ShapeDtypeStruct((num_tiles, 1, out_dim), jnp.float32),
        ),
        compiler_params=pltpu.CompilerParams(
            dimension_semantics=("parallel",),
            vmem_limit_bytes=vmem_limit,
        ),
    )(temp_arr, student3, teacher3, center)

    # Tiny final reductions + center EMA (wrapper-side, negligible cost).
    n_terms = 2 * (ncrops - 1)
    loss = jnp.sum(partial_loss[:, 0, 0]) / jnp.float32(batch * n_terms)
    batch_center = (jnp.sum(partial_csum[:, 0, :], axis=0, keepdims=True)
                    / jnp.float32(n_teacher_rows))
    new_center = (center.astype(jnp.float32) * jnp.float32(center_momentum)
                  + batch_center * jnp.float32(1.0 - center_momentum))
    return loss, new_center


def _reference(student_output, teacher_output, center, temp,
               ncrops, student_temp, center_momentum):
    """Pure-JAX reference of the PyTorch forward (for sanity check)."""
    batch = student_output.shape[0] // ncrops
    s = student_output / student_temp
    t = jax.nn.softmax((teacher_output - center) / temp, axis=-1)
    s_logsm = jax.nn.log_softmax(s, axis=-1)
    total, n = 0.0, 0
    for iq in range(2):
        q = t[iq * batch:(iq + 1) * batch]
        for v in range(ncrops):
            if v == iq:
                continue
            loss = jnp.sum(-q * s_logsm[v * batch:(v + 1) * batch], axis=-1)
            total = total + loss.mean()
            n += 1
    total = total / n
    bc = jnp.sum(teacher_output, axis=0, keepdims=True) / teacher_output.shape[0]
    new_center = center * center_momentum + bc * (1 - center_momentum)
    return total, new_center


if __name__ == "__main__":
    # Module hyper-parameters (deterministic, in-script).
    out_dim = 128
    ncrops = 4
    batch = 32
    warmup_teacher_temp = 0.04
    teacher_temp = 0.07
    warmup_teacher_temp_epochs = 3
    nepochs = 10
    student_temp = 0.1
    center_momentum = 0.9
    epoch = 1

    # teacher_temp_schedule (same as PyTorch __init__, host-side glue).
    teacher_temp_schedule = np.concatenate((
        np.linspace(warmup_teacher_temp, teacher_temp, warmup_teacher_temp_epochs),
        np.ones(nepochs - warmup_teacher_temp_epochs) * teacher_temp))
    temp_epoch = float(teacher_temp_schedule[epoch])

    key = jax.random.PRNGKey(0)
    k1, k2, k3 = jax.random.split(key, 3)
    student_output = jax.random.normal(k1, (ncrops * batch, out_dim), jnp.float32)
    teacher_output = jax.random.normal(k2, (2 * batch, out_dim), jnp.float32)
    center = 0.1 * jax.random.normal(k3, (1, out_dim), jnp.float32)

    # f32 run with explicit tile_batch=8 (4 grid tiles, exercises the pipeline).
    loss, new_center = dino_loss(
        student_output, teacher_output, center, temp_epoch,
        ncrops=ncrops, student_temp=student_temp,
        center_momentum=center_momentum, tile_batch=8)
    jax.block_until_ready((loss, new_center))

    ref_loss, ref_center = _reference(
        student_output, teacher_output, center, temp_epoch,
        ncrops, student_temp, center_momentum)
    np.testing.assert_allclose(np.asarray(loss), np.asarray(ref_loss),
                               rtol=1e-5, atol=1e-5)
    np.testing.assert_allclose(np.asarray(new_center), np.asarray(ref_center),
                               rtol=1e-5, atol=1e-6)

    # bf16 activations path with auto tile picking (16-row aligned tiles).
    s_bf = student_output.astype(jnp.bfloat16)
    t_bf = teacher_output.astype(jnp.bfloat16)
    loss_bf, center_bf = dino_loss(
        s_bf, t_bf, center, temp_epoch,
        ncrops=ncrops, student_temp=student_temp,
        center_momentum=center_momentum, tile_batch=None)
    jax.block_until_ready((loss_bf, center_bf))
    ref_loss_bf, ref_center_bf = _reference(
        s_bf.astype(jnp.float32), t_bf.astype(jnp.float32), center, temp_epoch,
        ncrops, student_temp, center_momentum)
    np.testing.assert_allclose(np.asarray(loss_bf), np.asarray(ref_loss_bf),
                               rtol=1e-3, atol=1e-3)
    np.testing.assert_allclose(np.asarray(center_bf), np.asarray(ref_center_bf),
                               rtol=1e-3, atol=1e-3)

    print("KERNEL_OK")
</pallas_src>

<mosaic_0001>
module attributes {stable_mosaic.version = 11 : i64} {
  func.func @_dino_loss_kernel(%arg0: i32, %arg1: memref<1x1xf32, #tpu.memory_space<smem>>, %arg2: memref<4x8x128xf32, #tpu.memory_space<vmem>>, %arg3: memref<2x8x128xf32, #tpu.memory_space<vmem>>, %arg4: memref<1x128xf32, #tpu.memory_space<vmem>>, %arg5: memref<1x1x128xf32, #tpu.memory_space<vmem>>, %arg6: memref<1x1x128xf32, #tpu.memory_space<vmem>>) attributes {dimension_semantics = [#tpu.dimension_semantics<parallel>], iteration_bounds = array<i64: 4>, scalar_prefetch = 0 : i64, scratch_operands = 0 : i64, tpu.core_type = #tpu.core_type<tc>, window_params = [{transform_indices = @transform_0, window_bounds = array<i64: 1, 1>}, {transform_indices = @transform_1, window_bounds = array<i64: 4, 8, 128>}, {transform_indices = @transform_2, window_bounds = array<i64: 2, 8, 128>}, {pipeline_mode = #tpu.pipeline_mode<synchronous>, transform_indices = @transform_3, window_bounds = array<i64: 1, 128>}, {transform_indices = @transform_4, window_bounds = array<i64: 1, 1, 128>}, {transform_indices = @transform_5, window_bounds = array<i64: 1, 1, 128>}]} {
    %c0 = arith.constant 0 : index
    %c0_0 = arith.constant 0 : index
    %0 = memref.load %arg1[%c0, %c0_0] : memref<1x1xf32, #tpu.memory_space<smem>>
    %cst = arith.constant 1.000000e+00 : f32
    %1 = arith.divf %cst, %0 : f32
    %c0_1 = arith.constant 0 : index
    %c0_2 = arith.constant 0 : index
    %2 = vector.load %arg4[%c0_1, %c0_2] : memref<1x128xf32, #tpu.memory_space<vmem>>, vector<1x128xf32>
    %c0_3 = arith.constant 0 : index
    %c0_4 = arith.constant 0 : index
    %c0_5 = arith.constant 0 : index
    %3 = vector.load %arg3[%c0_3, %c0_4, %c0_5] : memref<2x8x128xf32, #tpu.memory_space<vmem>>, vector<1x8x128xf32>
    %4 = vector.shape_cast %3 : vector<1x8x128xf32> to vector<8x128xf32>
    %cst_6 = arith.constant dense<0.000000e+00> : vector<128xf32>
    %5 = vector.multi_reduction <add>, %4, %cst_6 [0] : vector<8x128xf32> to vector<128xf32>
    %6 = vector.shape_cast %5 : vector<128xf32> to vector<1x128xf32>
    %7 = vector.broadcast %2 : vector<1x128xf32> to vector<8x128xf32>
    %8 = arith.subf %4, %7 : vector<8x128xf32>
    %9 = vector.broadcast %1 : f32 to vector<8x128xf32>
    %10 = arith.mulf %8, %9 : vector<8x128xf32>
    %cst_7 = arith.constant dense<0xFF800000> : vector<8xf32>
    %11 = vector.multi_reduction <maximumf>, %10, %cst_7 [1] : vector<8x128xf32> to vector<8xf32>
    %12 = vector.shape_cast %11 : vector<8xf32> to vector<8x1xf32>
    %13 = vector.broadcast %12 : vector<8x1xf32> to vector<8x128xf32>
    %14 = arith.subf %10, %13 : vector<8x128xf32>
    %15 = math.exp %14 : vector<8x128xf32>
    %cst_8 = arith.constant dense<0.000000e+00> : vector<8xf32>
    %16 = vector.multi_reduction <add>, %15, %cst_8 [1] : vector<8x128xf32> to vector<8xf32>
    %17 = vector.shape_cast %16 : vector<8xf32> to vector<8x1xf32>
    %18 = tpu.reciprocal %17 : vector<8x1xf32> -> vector<8x1xf32>
    %19 = vector.broadcast %18 : vector<8x1xf32> to vector<8x128xf32>
    %20 = arith.mulf %15, %19 : vector<8x128xf32>
    %c1 = arith.constant 1 : index
    %c0_9 = arith.constant 0 : index
    %c0_10 = arith.constant 0 : index
    %21 = vector.load %arg3[%c1, %c0_9, %c0_10] : memref<2x8x128xf32, #tpu.memory_space<vmem>>, vector<1x8x128xf32>
    %22 = vector.shape_cast %21 : vector<1x8x128xf32> to vector<8x128xf32>
    %cst_11 = arith.constant dense<0.000000e+00> : vector<128xf32>
    %23 = vector.multi_reduction <add>, %22, %cst_11 [0] : vector<8x128xf32> to vector<128xf32>
    %24 = vector.shape_cast %23 : vector<128xf32> to vector<1x128xf32>
    %25 = vector.broadcast %2 : vector<1x128xf32> to vector<8x128xf32>
    %26 = arith.subf %22, %25 : vector<8x128xf32>
    %27 = vector.broadcast %1 : f32 to vector<8x128xf32>
    %28 = arith.mulf %26, %27 : vector<8x128xf32>
    %cst_12 = arith.constant dense<0xFF800000> : vector<8xf32>
    %29 = vector.multi_reduction <maximumf>, %28, %cst_12 [1] : vector<8x128xf32> to vector<8xf32>
    %30 = vector.shape_cast %29 : vector<8xf32> to vector<8x1xf32>
    %31 = vector.broadcast %30 : vector<8x1xf32> to vector<8x128xf32>
    %32 = arith.subf %28, %31 : vector<8x128xf32>
    %33 = math.exp %32 : vector<8x128xf32>
    %cst_13 = arith.constant dense<0.000000e+00> : vector<8xf32>
    %34 = vector.multi_reduction <add>, %33, %cst_13 [1] : vector<8x128xf32> to vector<8xf32>
    %35 = vector.shape_cast %34 : vector<8xf32> to vector<8x1xf32>
    %36 = tpu.reciprocal %35 : vector<8x1xf32> -> vector<8x1xf32>
    %37 = vector.broadcast %36 : vector<8x1xf32> to vector<8x128xf32>
    %38 = arith.mulf %33, %37 : vector<8x128xf32>
    %39 = arith.addf %6, %24 : vector<1x128xf32>
    %40 = vector.shape_cast %39 : vector<1x128xf32> to vector<1x1x128xf32>
    %c0_14 = arith.constant 0 : index
    %c0_15 = arith.constant 0 : index
    %c0_16 = arith.constant 0 : index
    %41 = vector.load %arg6[%c0_14, %c0_15, %c0_16] : memref<1x1x128xf32, #tpu.memory_space<vmem>>, vector<1x1x128xf32>
    tpu.vector_store %arg6[%c0_14, %c0_15, %c0_16], %40 {strides = array<i32>} : memref<1x1x128xf32, #tpu.memory_space<vmem>>, vector<1x1x128xf32>,
    %c0_17 = arith.constant 0 : index
    %c0_18 = arith.constant 0 : index
    %c0_19 = arith.constant 0 : index
    %42 = vector.load %arg2[%c0_17, %c0_18, %c0_19] : memref<4x8x128xf32, #tpu.memory_space<vmem>>, vector<1x8x128xf32>
    %43 = vector.shape_cast %42 : vector<1x8x128xf32> to vector<8x128xf32>
    %cst_20 = arith.constant 1.000000e+01 : f32
    %44 = vector.broadcast %cst_20 : f32 to vector<8x128xf32>
    %45 = arith.mulf %43, %44 : vector<8x128xf32>
    %cst_21 = arith.constant dense<0xFF800000> : vector<8xf32>
    %46 = vector.multi_reduction <maximumf>, %45, %cst_21 [1] : vector<8x128xf32> to vector<8xf32>
    %47 = vector.shape_cast %46 : vector<8xf32> to vector<8x1xf32>
    %48 = vector.broadcast %47 : vector<8x1xf32> to vector<8x128xf32>
    %49 = arith.subf %45, %48 : vector<8x128xf32>
    %50 = math.exp %49 : vector<8x128xf32>
    %cst_22 = arith.constant dense<0.000000e+00> : vector<8xf32>
    %51 = vector.multi_reduction <add>, %50, %cst_22 [1] : vector<8x128xf32> to vector<8xf32>
    %52 = vector.shape_cast %51 : vector<8xf32> to vector<8x1xf32>
    %53 = math.log %52 : vector<8x1xf32>
    %54 = arith.mulf %38, %49 : vector<8x128xf32>
    %cst_23 = arith.constant dense<0.000000e+00> : vector<8xf32>
    %55 = vector.multi_reduction <add>, %54, %cst_23 [1] : vector<8x128xf32> to vector<8xf32>
    %56 = vector.shape_cast %55 : vector<8xf32> to vector<8x1xf32>
    %cst_24 = arith.constant 1.000000e+00 : f32
    %57 = vector.broadcast %cst_24 : f32 to vector<8x1xf32>
    %58 = arith.mulf %57, %53 : vector<8x1xf32>
    %59 = arith.subf %56, %58 : vector<8x1xf32>
    %c1_25 = arith.constant 1 : index
    %c0_26 = arith.constant 0 : index
    %c0_27 = arith.constant 0 : index
    %60 = vector.load %arg2[%c1_25, %c0_26, %c0_27] : memref<4x8x128xf32, #tpu.memory_space<vmem>>, vector<1x8x128xf32>
    %61 = vector.shape_cast %60 : vector<1x8x128xf32> to vector<8x128xf32>
    %cst_28 = arith.constant 1.000000e+01 : f32
    %62 = vector.broadcast %cst_28 : f32 to vector<8x128xf32>
    %63 = arith.mulf %61, %62 : vector<8x128xf32>
    %cst_29 = arith.constant dense<0xFF800000> : vector<8xf32>
    %64 = vector.multi_reduction <maximumf>, %63, %cst_29 [1] : vector<8x128xf32> to vector<8xf32>
    %65 = vector.shape_cast %64 : vector<8xf32> to vector<8x1xf32>
    %66 = vector.broadcast %65 : vector<8x1xf32> to vector<8x128xf32>
    %67 = arith.subf %63, %66 : vector<8x128xf32>
    %68 = math.exp %67 : vector<8x128xf32>
    %cst_30 = arith.constant dense<0.000000e+00> : vector<8xf32>
    %69 = vector.multi_reduction <add>, %68, %cst_30 [1] : vector<8x128xf32> to vector<8xf32>
    %70 = vector.shape_cast %69 : vector<8xf32> to vector<8x1xf32>
    %71 = math.log %70 : vector<8x1xf32>
    %72 = arith.mulf %20, %67 : vector<8x128xf32>
    %cst_31 = arith.constant dense<0.000000e+00> : vector<8xf32>
    %73 = vector.multi_reduction <add>, %72, %cst_31 [1] : vector<8x128xf32> to vector<8xf32>
    %74 = vector.shape_cast %73 : vector<8xf32> to vector<8x1xf32>
    %cst_32 = arith.constant 1.000000e+00 : f32
    %75 = vector.broadcast %cst_32 : f32 to vector<8x1xf32>
    %76 = arith.mulf %75, %71 : vector<8x1xf32>
    %77 = arith.subf %74, %76 : vector<8x1xf32>
    %78 = arith.addf %59, %77 : vector<8x1xf32>
    %79 = arith.addf %20, %38 : vector<8x128xf32>
    %cst_33 = arith.constant 1.000000e+01 : f32
    %c2_i32 = arith.constant 2 : i32
    %c2_i32_34 = arith.constant 2 : i32
    %80 = arith.addi %c2_i32, %c2_i32_34 : i32
    %c1_i32 = arith.constant 1 : i32
    %81 = scf.for %arg7 = %c2_i32 to %80 step %c1_i32 iter_args(%arg8 = %78) -> (vector<8x1xf32>)  : i32 {
      %89 = arith.index_cast %arg7 : i32 to index
      %c0_41 = arith.constant 0 : index
      %c0_42 = arith.constant 0 : index
      %90 = vector.load %arg2[%89, %c0_41, %c0_42] : memref<4x8x128xf32, #tpu.memory_space<vmem>>, vector<1x8x128xf32>
      %91 = vector.shape_cast %90 : vector<1x8x128xf32> to vector<8x128xf32>
      %92 = vector.broadcast %cst_33 : f32 to vector<8x128xf32>
      %93 = arith.mulf %91, %92 : vector<8x128xf32>
      %cst_43 = arith.constant dense<0xFF800000> : vector<8xf32>
      %94 = vector.multi_reduction <maximumf>, %93, %cst_43 [1] : vector<8x128xf32> to vector<8xf32>
      %95 = vector.shape_cast %94 : vector<8xf32> to vector<8x1xf32>
      %96 = vector.broadcast %95 : vector<8x1xf32> to vector<8x128xf32>
      %97 = arith.subf %93, %96 : vector<8x128xf32>
      %98 = math.exp %97 : vector<8x128xf32>
      %cst_44 = arith.constant dense<0.000000e+00> : vector<8xf32>
      %99 = vector.multi_reduction <add>, %98, %cst_44 [1] : vector<8x128xf32> to vector<8xf32>
      %100 = vector.shape_cast %99 : vector<8xf32> to vector<8x1xf32>
      %101 = math.log %100 : vector<8x1xf32>
      %102 = arith.mulf %79, %97 : vector<8x128xf32>
      %cst_45 = arith.constant dense<0.000000e+00> : vector<8xf32>
      %103 = vector.multi_reduction <add>, %102, %cst_45 [1] : vector<8x128xf32> to vector<8xf32>
      %104 = vector.shape_cast %103 : vector<8xf32> to vector<8x1xf32>
      %cst_46 = arith.constant 2.000000e+00 : f32
      %105 = vector.broadcast %cst_46 : f32 to vector<8x1xf32>
      %106 = arith.mulf %105, %101 : vector<8x1xf32>
      %107 = arith.subf %104, %106 : vector<8x1xf32>
      %108 = arith.addf %arg8, %107 : vector<8x1xf32>
      scf.yield %108 : vector<8x1xf32>
    }
    %c2_i32_35 = arith.constant 2 : i32
    %82 = vector.shape_cast %81 : vector<8x1xf32> to vector<1x8x1xf32>
    %cst_36 = arith.constant dense<0.000000e+00> : vector<1xf32>
    %83 = vector.multi_reduction <add>, %82, %cst_36 [1, 2] : vector<1x8x1xf32> to vector<1xf32>
    %84 = vector.shape_cast %83 : vector<1xf32> to vector<1x1x1xf32>
    %85 = vector.extract %84[0, 0, 0] : f32 from vector<1x1x1xf32>
    %cst_37 = arith.constant 0.000000e+00 : f32
    %86 = arith.subf %cst_37, %85 : f32
    %87 = vector.broadcast %86 : f32 to vector<1x1x128xf32>
    %c0_38 = arith.constant 0 : index
    %c0_39 = arith.constant 0 : index
    %c0_40 = arith.constant 0 : index
    %88 = vector.load %arg5[%c0_38, %c0_39, %c0_40] : memref<1x1x128xf32, #tpu.memory_space<vmem>>, vector<1x1x128xf32>
    tpu.vector_store %arg5[%c0_38, %c0_39, %c0_40], %87 {strides = array<i32>} : memref<1x1x128xf32, #tpu.memory_space<vmem>>, vector<1x1x128xf32>,
    return
  }
  func.func @transform_0(%arg0: i32) -> (i32, i32) {
    %c0_i32 = arith.constant 0 : i32
    %c0_i32_0 = arith.constant 0 : i32
    %c0_i32_1 = arith.constant 0 : i32
    return %c0_i32, %c0_i32_0 : i32, i32
  }
  func.func @transform_1(%arg0: i32) -> (i32, i32, i32) {
    %c0_i32 = arith.constant 0 : i32
    %c0_i32_0 = arith.constant 0 : i32
    %c0_i32_1 = arith.constant 0 : i32
    return %c0_i32, %arg0, %c0_i32_0 : i32, i32, i32
  }
  func.func @transform_2(%arg0: i32) -> (i32, i32, i32) {
    %c0_i32 = arith.constant 0 : i32
    %c0_i32_0 = arith.constant 0 : i32
    %c0_i32_1 = arith.constant 0 : i32
    return %c0_i32, %arg0, %c0_i32_0 : i32, i32, i32
  }
  func.func @transform_3(%arg0: i32) -> (i32, i32) {
    %c0_i32 = arith.constant 0 : i32
    %c0_i32_0 = arith.constant 0 : i32
    %c0_i32_1 = arith.constant 0 : i32
    return %c0_i32, %c0_i32_0 : i32, i32
  }
  func.func @transform_4(%arg0: i32) -> (i32, i32, i32) {
    %c0_i32 = arith.constant 0 : i32
    %c0_i32_0 = arith.constant 0 : i32
    %c0_i32_1 = arith.constant 0 : i32
    return %arg0, %c0_i32, %c0_i32_0 : i32, i32, i32
  }
  func.func @transform_5(%arg0: i32) -> (i32, i32, i32) {
    %c0_i32 = arith.constant 0 : i32
    %c0_i32_0 = arith.constant 0 : i32
    %c0_i32_1 = arith.constant 0 : i32
    return %arg0, %c0_i32, %c0_i32_0 : i32, i32, i32
  }
}

</mosaic_0001>

<llo_original>
// kernel: tpu_custom_call.1
$region0: #{tpu_custom_call.1}
  #allocation0 [shape = 'u32[]', space=smem, size = 0x4, offset = 0x4, fixed_abs, tag = 'smem constant byte address 0x4 - core index']
  #allocation1 [shape = 'u32[144,128]{1,0:T(1,128)}', space=vmem, size = 0x12000, scoped, tag = 'internal scratch']
  #allocation2 [shape = 'f32[1,1]{1,0:T(1,128)S(6)}', space=smem, size = 0x200, scoped, tag = 'scoped memory for tpu_custom_call.1']
  %s0 = inlined_call_operand.<no memory space> [shape: f32[1,1], index: 0, kind: input, shape index: {}]
  %s1 = inlined_call_operand.hbm [shape: f32[4,32,128], index: 1, kind: input, shape index: {}]
  %s2 = inlined_call_operand.hbm [shape: f32[2,32,128], index: 2, kind: input, shape index: {}]
  %s3 = inlined_call_operand.vmem [shape: f32[1,128], index: 3, kind: input, shape index: {}]
  %s4 = inlined_call_operand.hbm [shape: f32[4,1,128], index: 4, kind: output, shape index: {0}]
  %s5 = inlined_call_operand.hbm [shape: f32[4,1,128], index: 5, kind: output, shape index: {1}]
  %6 = xla_tuple %s4, %s5
  %s7 = sld [smem:[#allocation0]]
  $region72: #{tpu_custom_call.1} parent=0
    _
  %s9 = ssub.s32 1, %s7
  %s10 = scalar_select 0, %s9, %s7
  %11 = sst [smem:[#allocation2]] %s0
  $region1: #{tpu_custom_call.1} parent=0
    #allocation3 [shape = 'u8[32768]{0}', space=vmem, size = 0x8000, scoped, tag = 'input window, operand 1']
    #allocation4 [shape = 's32[2]{0}', space=sflag, size = 0x8, scoped, tag = 'scoped memory for tpu_custom_call.1']
    #allocation5 [shape = 's32[2]{0}', space=sflag, size = 0x8, scoped, tag = 'scoped memory for tpu_custom_call.1']
    #allocation6 [shape = 'u8[16384]{0}', space=vmem, size = 0x4000, scoped, tag = 'input window, operand 2']
    #allocation7 [shape = 's32[2]{0}', space=sflag, size = 0x8, scoped, tag = 'scoped memory for tpu_custom_call.1']
    #allocation8 [shape = 'u8[1024]{0}', space=vmem, size = 0x400, scoped, tag = 'output window, operand 0']
    #allocation9 [shape = 'u8[1024]{0}', space=vmem, size = 0x400, scoped, tag = 'output window, operand 1']
    #allocation10 [shape = 's32[2]{0}', space=sflag, size = 0x8, scoped, tag = 'scoped memory for tpu_custom_call.1']
    %12 = vsyncpa [#allocation4], 0
    %s13 = scalar_lea.sflag [#allocation4], 1
    %14 = vsyncpa %s13, 0
    %15 = vsyncpa [#allocation7], 0
    %s16 = scalar_lea.sflag [#allocation7], 1
    %17 = vsyncpa %s16, 0
    %18 = vsyncpa [#allocation5], 0
    %s19 = scalar_lea.sflag [#allocation5], 1
    %20 = vsyncpa %s19, 0
    %21 = vsyncpa [#allocation10], 0
    %s22 = scalar_lea.sflag [#allocation10], 1
    %23 = vsyncpa %s22, 0
    loop: start=0, step=1, limit=6
    $region2: #{tpu_custom_call.1} parent=1 // loop_pre_header
      _
    $region3: #{tpu_custom_call.1} parent=1 // loop_header
      %s25 = sphi 0, %s29
      %p26 = scmp.ge.s32.totalorder %s25, 6
      %s33 = sphi 0, %s33
      %s35 = sphi 0, %s33
      %s36 = sphi 0, %s35
      %s50 = sphi 0, %s36
      %s56 = sphi 0, %s58
      %s59 = sphi 0, %s56
      %s60 = sphi 0, %s59
      %s76 = sphi 0, %s60
      %s82 = sphi 0, %s84
      %s85 = sphi 0, %s82
      %s86 = sphi 0, %s85
      %s102 = sphi 0, %s86
      %s106 = sphi 0, %s106
      %s108 = sphi 0, %s106
      %s109 = sphi 0, %s108
      %s123 = sphi 0, %s109
      %s129 = sphi 0, %s131
      %s132 = sphi 0, %s129
      %s133 = sphi 0, %s132
      %s149 = sphi 0, %s133
      %s155 = sphi 0, %s157
      %s158 = sphi 0, %s155
      %s159 = sphi 0, %s158
      %s175 = sphi 0, %s159
    $region4: #{tpu_custom_call.1} parent=1 // loop_header_branch
      %28 = sbr.rel (%p26) target = $region8
    $region5: #{tpu_custom_call.1} parent=1 // loop_body
      %s30 = ssub.s32 %s25, 1
      %s31 = ssub.s32 %s25, 2
      %s32 = sadd.s32 %s25, 1
      %s34 = sadd.s32 %s33, 1
      %p37 = scmp.eq.s32.totalorder %s25, 3
      %p38 = scmp.ne.s32.totalorder %s33, %s35
      %p39 = scmp.eq.s32.totalorder %s25, 0
      %p40 = por %p38, %p39
      %p41 = scmp.ne.s32.totalorder %s33, %s35
      %p42 = scmp.eq.s32.totalorder %s30, 3
      %p43 = por %p41, %p42
      %p44 = scmp.ne.s32.totalorder %s35, %s36
      %p45 = scmp.eq.s32.totalorder %s30, 0
      %p46 = por %p44, %p45
      %p47 = scmp.ne.s32.totalorder %s35, %s36
      %p48 = scmp.eq.s32.totalorder %s31, 3
      %p49 = por %p47, %p48
      %p51 = scmp.ne.s32.totalorder %s36, %s50
      %p52 = scmp.eq.s32.totalorder %s31, 0
      %p53 = por %p51, %p52
      %s54 = ssub.s32 %s25, %s32
      %p55 = scmp.eq.s32.totalorder %s54, 0
      %s57 = sadd.s32 %s56, 1
      %s58 = scalar_select %p55, %s56, %s57
      %p61 = pneg %p55
      %p62 = scmp.eq.s32.totalorder %s25, 3
      %p63 = por %p61, %p62
      %p64 = scmp.ne.s32.totalorder %s56, %s59
      %p65 = scmp.eq.s32.totalorder %s25, 0
      %p66 = por %p64, %p65
      %p67 = scmp.ne.s32.totalorder %s56, %s59
      %p68 = scmp.eq.s32.totalorder %s30, 3
      %p69 = por %p67, %p68
      %p70 = scmp.ne.s32.totalorder %s59, %s60
      %p71 = scmp.eq.s32.totalorder %s30, 0
      %p72 = por %p70, %p71
      %p73 = scmp.ne.s32.totalorder %s59, %s60
      %p74 = scmp.eq.s32.totalorder %s31, 3
      %p75 = por %p73, %p74
      %p77 = scmp.ne.s32.totalorder %s60, %s76
      %p78 = scmp.eq.s32.totalorder %s31, 0
      %p79 = por %p77, %p78
      %s80 = ssub.s32 %s25, %s32
      %p81 = scmp.eq.s32.totalorder %s80, 0
      %s83 = sadd.s32 %s82, 1
      %s84 = scalar_select %p81, %s82, %s83
      %p87 = pneg %p81
      %p88 = scmp.eq.s32.totalorder %s25, 3
      %p89 = por %p87, %p88
      %p90 = scmp.ne.s32.totalorder %s82, %s85
      %p91 = scmp.eq.s32.totalorder %s25, 0
      %p92 = por %p90, %p91
      %p93 = scmp.ne.s32.totalorder %s82, %s85
      %p94 = scmp.eq.s32.totalorder %s30, 3
      %p95 = por %p93, %p94
      %p96 = scmp.ne.s32.totalorder %s85, %s86
      %p97 = scmp.eq.s32.totalorder %s30, 0
      %p98 = por %p96, %p97
      %p99 = scmp.ne.s32.totalorder %s85, %s86
      %p100 = scmp.eq.s32.totalorder %s31, 3
      %p101 = por %p99, %p100
      %p103 = scmp.ne.s32.totalorder %s86, %s102
      %p104 = scmp.eq.s32.totalorder %s31, 0
      %p105 = por %p103, %p104
      %s107 = sadd.s32 %s106, 1
      %p110 = scmp.eq.s32.totalorder %s25, 3
      %p111 = scmp.ne.s32.totalorder %s106, %s108
      %p112 = scmp.eq.s32.totalorder %s25, 0
      %p113 = por %p111, %p112
      %p114 = scmp.ne.s32.totalorder %s106, %s108
      %p115 = scmp.eq.s32.totalorder %s30, 3
      %p116 = por %p114, %p115
      %p117 = scmp.ne.s32.totalorder %s108, %s109
      %p118 = scmp.eq.s32.totalorder %s30, 0
      %p119 = por %p117, %p118
      %p120 = scmp.ne.s32.totalorder %s108, %s109
      %p121 = scmp.eq.s32.totalorder %s31, 3
      %p122 = por %p120, %p121
      %p124 = scmp.ne.s32.totalorder %s109, %s123
      %p125 = scmp.eq.s32.totalorder %s31, 0
      %p126 = por %p124, %p125
      %s127 = ssub.s32 %s25, %s32
      %p128 = scmp.eq.s32.totalorder %s127, 0
      %s130 = sadd.s32 %s129, 1
      %s131 = scalar_select %p128, %s129, %s130
      %p134 = pneg %p128
      %p135 = scmp.eq.s32.totalorder %s25, 3
      %p136 = por %p134, %p135
      %p137 = scmp.ne.s32.totalorder %s129, %s132
      %p138 = scmp.eq.s32.totalorder %s25, 0
      %p139 = por %p137, %p138
      %p140 = scmp.ne.s32.totalorder %s129, %s132
      %p141 = scmp.eq.s32.totalorder %s30, 3
      %p142 = por %p140, %p141
      %p143 = scmp.ne.s32.totalorder %s132, %s133
      %p144 = scmp.eq.s32.totalorder %s30, 0
      %p145 = por %p143, %p144
      %p146 = scmp.ne.s32.totalorder %s132, %s133
      %p147 = scmp.eq.s32.totalorder %s31, 3
      %p148 = por %p146, %p147
      %p150 = scmp.ne.s32.totalorder %s133, %s149
      %p151 = scmp.eq.s32.totalorder %s31, 0
      %p152 = por %p150, %p151
      %s153 = ssub.s32 %s25, %s32
      %p154 = scmp.eq.s32.totalorder %s153, 0
      %s156 = sadd.s32 %s155, 1
      %s157 = scalar_select %p154, %s155, %s156
      %p160 = pneg %p154
      %p161 = scmp.eq.s32.totalorder %s25, 3
      %p162 = por %p160, %p161
      %p163 = scmp.ne.s32.totalorder %s155, %s158
      %p164 = scmp.eq.s32.totalorder %s25, 0
      %p165 = por %p163, %p164
      %p166 = scmp.ne.s32.totalorder %s155, %s158
      %p167 = scmp.eq.s32.totalorder %s30, 3
      %p168 = por %p166, %p167
      %p169 = scmp.ne.s32.totalorder %s158, %s159
      %p170 = scmp.eq.s32.totalorder %s30, 0
      %p171 = por %p169, %p170
      %p172 = scmp.ne.s32.totalorder %s158, %s159
      %p173 = scmp.eq.s32.totalorder %s31, 3
      %p174 = por %p172, %p173
      %p176 = scmp.ne.s32.totalorder %s159, %s175
      %p177 = scmp.eq.s32.totalorder %s31, 0
      %p178 = por %p176, %p177
      %p179 = scmp.le.s32.totalorder 1, %s25
      %p180 = scmp.lt.s32.totalorder %s25, 5
      %p181 = pnand %p179, %p180
      %p182 = pneg %p181
      // Predicated region
      $region9: #{tpu_custom_call.1} parent=5 // pred_check
        _
      $region10: #{tpu_custom_call.1} parent=5 // pred_check_branch
        %184 = sbr.rel (%p181) target = $region12
      $region11: #{tpu_custom_call.1} parent=5 // pred_region
        %s185 = ssub.s32 %s25, 1
        // Predicated region
        $region13: #{tpu_custom_call.1} parent=11 // pred_check
          %p186 = pneg %p46
        $region14: #{tpu_custom_call.1} parent=11 // pred_check_branch
          %188 = sbr.rel (%p186) target = $region16
        $region15: #{tpu_custom_call.1} parent=11 // pred_region
          _
        $region16: #{tpu_custom_call.1} parent=11 // pred_fallthru
          _
        // Predicated region
        $region17: #{tpu_custom_call.1} parent=11 // pred_check
          %p189 = pneg %p119
        $region18: #{tpu_custom_call.1} parent=11 // pred_check_branch
          %191 = sbr.rel (%p189) target = $region20
        $region19: #{tpu_custom_call.1} parent=11 // pred_region
          _
        $region20: #{tpu_custom_call.1} parent=11 // pred_fallthru
          _
      $region12: #{tpu_custom_call.1} parent=5 // pred_fallthru
        _
      %p192 = scmp.lt.s32.totalorder %s25, 4
      // Predicated region
      $region21: #{tpu_custom_call.1} parent=5 // pred_check
        %p193 = pneg %p192
      $region22: #{tpu_custom_call.1} parent=5 // pred_check_branch
        %195 = sbr.rel (%p193) target = $region24
      $region23: #{tpu_custom_call.1} parent=5 // pred_region
        // Predicated region
        $region25: #{tpu_custom_call.1} parent=23 // pred_check
          %p196 = pneg %p66
        $region26: #{tpu_custom_call.1} parent=23 // pred_check_branch
          %198 = sbr.rel (%p196) target = $region28
        $region27: #{tpu_custom_call.1} parent=23 // pred_region
          %s199 = sand.u32 %s56, 1
          %s200 = scalar_lea.sflag [#allocation4], %s199
          %s201 = sand.u32 %s56, 1
          %s202 = smul.addr %s201, 32
          %s203 = scalar_lea.vmem [#allocation3], %s202
          %s205 = ssub.s32 512, 512
          %206 = vsyncadd %s200, %s205
          %s207 = smul.addr %s25, 128
          %s208 = scalar_lea.hbm %s1, %s207
          %s209 = sshll.u32 %s203, 4
          %s210 = int_to_ptr.vmem [resolvable:$true] %s209
          %215 = dma.hbm_to_vmem [thread:$0]  %s208, 512, %s210, %s200, 512, 128, 8
        $region28: #{tpu_custom_call.1} parent=23 // pred_fallthru
          _
        // Predicated region
        $region29: #{tpu_custom_call.1} parent=23 // pred_check
          %p216 = pneg %p92
        $region30: #{tpu_custom_call.1} parent=23 // pred_check_branch
          %218 = sbr.rel (%p216) target = $region32
        $region31: #{tpu_custom_call.1} parent=23 // pred_region
          %s219 = sand.u32 %s82, 1
          %s220 = scalar_lea.sflag [#allocation7], %s219
          %s221 = sand.u32 %s82, 1
          %s222 = smul.addr %s221, 16
          %s223 = scalar_lea.vmem [#allocation6], %s222
          %s225 = ssub.s32 256, 256
          %226 = vsyncadd %s220, %s225
          %s227 = smul.addr %s25, 128
          %s228 = scalar_lea.hbm %s2, %s227
          %s229 = sshll.u32 %s223, 4
          %s230 = int_to_ptr.vmem [resolvable:$true] %s229
          %235 = dma.hbm_to_vmem [thread:$0]  %s228, 256, %s230, %s220, 512, 128, 8
        $region32: #{tpu_custom_call.1} parent=23 // pred_fallthru
          _
      $region24: #{tpu_custom_call.1} parent=5 // pred_fallthru
        _
      %p236 = scmp.le.s32.totalorder 1, %s25
      %p237 = scmp.lt.s32.totalorder %s25, 5
      %p238 = pnand %p236, %p237
      %p239 = pneg %p238
      // Predicated region
      $region33: #{tpu_custom_call.1} parent=5 // pred_check
        _
      $region34: #{tpu_custom_call.1} parent=5 // pred_check_branch
        %241 = sbr.rel (%p238) target = $region36
      $region35: #{tpu_custom_call.1} parent=5 // pred_region
        %s242 = ssub.s32 %s25, 1
        %s243 = sand.u32 %s59, 1
        %s244 = scalar_lea.sflag [#allocation4], %s243
        %s245 = sand.u32 %s59, 1
        %s246 = smul.addr %s245, 32
        %s247 = scalar_lea.vmem [#allocation3], %s246
        // Predicated region
        $region37: #{tpu_custom_call.1} parent=35 // pred_check
          %p248 = pneg %p72
        $region38: #{tpu_custom_call.1} parent=35 // pred_check_branch
          %250 = sbr.rel (%p248) target = $region40
        $region39: #{tpu_custom_call.1} parent=35 // pred_region
          %251 = dma.done %s244, 512
        $region40: #{tpu_custom_call.1} parent=35 // pred_fallthru
          _
        %s252 = sand.u32 %s85, 1
        %s253 = scalar_lea.sflag [#allocation7], %s252
        %s254 = sand.u32 %s85, 1
        %s255 = smul.addr %s254, 16
        %s256 = scalar_lea.vmem [#allocation6], %s255
        // Predicated region
        $region41: #{tpu_custom_call.1} parent=35 // pred_check
          %p257 = pneg %p98
        $region42: #{tpu_custom_call.1} parent=35 // pred_check_branch
          %259 = sbr.rel (%p257) target = $region44
        $region43: #{tpu_custom_call.1} parent=35 // pred_region
          %260 = dma.done %s253, 256
        $region44: #{tpu_custom_call.1} parent=35 // pred_fallthru
          _
        %p261 = pneg %p46
        %p262 = pneg %p43
        %s263 = sand.u32 %s59, 1
        %s264 = scalar_lea.sflag [#allocation4], %s263
        %s265 = sand.u32 %s59, 1
        %s266 = smul.addr %s265, 32
        %s267 = scalar_lea.vmem [#allocation3], %s266
        %p268 = pneg %p72
        %p269 = pneg %p69
        %s270 = sand.u32 %s85, 1
        %s271 = scalar_lea.sflag [#allocation7], %s270
        %s272 = sand.u32 %s85, 1
        %s273 = smul.addr %s272, 16
        %s274 = scalar_lea.vmem [#allocation6], %s273
        %p275 = pneg %p98
        %p276 = pneg %p95
        %p277 = pneg %p119
        %p278 = pneg %p116
        %p279 = pneg %p145
        %p280 = pneg %p142
        %s281 = sand.u32 %s132, 1
        %s282 = scalar_lea.sflag [#allocation5], %s281
        %s283 = sand.u32 %s132, 1
        %s284 = scalar_lea.vmem [#allocation8], %s283
        %p285 = pneg %p171
        %p286 = pneg %p168
        %s287 = sand.u32 %s158, 1
        %s288 = scalar_lea.sflag [#allocation10], %s287
        %s289 = sand.u32 %s158, 1
        %s290 = scalar_lea.vmem [#allocation9], %s289
        %s291 = sld [smem:[#allocation2]]
        %v292 = vstv %s291
        %v293 = vrcp.pop %v292
        %s294 = vtos %v293
        %v295 = vld [vmem:[%s3] sm:$0x1]
        %v296 = vld [vmem:[%s256] sm:$0xff]
        %v297 = vrot.slane %v296, 4
        %v298 = vadd.f32 %v296, %v297
        %v299 = vrot.slane %v298, 2
        %v300 = vadd.f32 %v298, %v299
        %v301 = vrot.slane %v300, 1
        %v302 = vadd.f32 %v300, %v301
        %v304 = vlaneseq
        %v305 = vshrl.u32 %v304, 7
        %v306 = vsub.s32 0, %v305
        %v307 = vrot.slane %v295, %v306
        %v309 = vsub.f32 %v296, %v307
        %v310 = vstv %s294
        %v311 = vmul.f32 %v309, %v310
        %312 = vmax.xlane.f32.xlu0 %v311
        %v313 = vpop.xlane.xlu0 %312
        %v314 = vsub.f32 %v311, %v313
        %v315 = vmul.f32 %v314, 1.442695
        %v316 = vpow.pop %v315
        %317 = vadd.xlane.f32.xlu0 %v316
        %v318 = vpop.xlane.xlu0 %317
        %v319 = vrcp.pop %v318
        %v320 = vmul.f32 %v316, %v319
        %s321 = scalar_lea.vmem %s256, 8 [#allocation6]
        %v322 = vld [vmem:[%s321] sm:$0xff]
        %v323 = vrot.slane %v322, 4
        %v324 = vadd.f32 %v322, %v323
        %v325 = vrot.slane %v324, 2
        %v326 = vadd.f32 %v324, %v325
        %v327 = vrot.slane %v326, 1
        %v328 = vadd.f32 %v326, %v327
        %v329 = vsub.f32 %v322, %v307
        %v330 = vmul.f32 %v329, %v310
        %331 = vmax.xlane.f32.xlu0 %v330
        %v332 = vpop.xlane.xlu0 %331
        %v333 = vsub.f32 %v330, %v332
        %v334 = vmul.f32 %v333, 1.442695
        %v335 = vpow.pop %v334
        %336 = vadd.xlane.f32.xlu0 %v335
        %v337 = vpop.xlane.xlu0 %336
        %v338 = vrcp.pop %v337
        %v339 = vmul.f32 %v335, %v338
        %v340 = vadd.f32 %v302, %v328
        %341 = vst [vmem:[%s290] sm:$0x1] %v340
        %v342 = vld [vmem:[%s247] sm:$0xff]
        %v343 = vmul.f32 %v342, 10.0
        %344 = vmax.xlane.f32.xlu0 %v343
        %v345 = vpop.xlane.xlu0 %344
        %v346 = vsub.f32 %v343, %v345
        %v347 = vmul.f32 %v346, 1.442695
        %v348 = vpow.pop %v347
        %349 = vadd.xlane.f32.xlu0 %v348
        %v350 = vpop.xlane.xlu0 %349
        %v351 = vlog2.pop %v350
        %v352 = vmul.f32 %v351, 0.6931472
        %v353 = vmul.f32 %v339, %v346
        %354 = vadd.xlane.f32.xlu0 %v353
        %v355 = vpop.xlane.xlu0 %354
        %v356 = vsub.f32 %v355, %v352
        %s357 = scalar_lea.vmem %s247, 8 [#allocation3]
        %v358 = vld [vmem:[%s357] sm:$0xff]
        %v359 = vmul.f32 %v358, 10.0
        %360 = vmax.xlane.f32.xlu0 %v359
        %v361 = vpop.xlane.xlu0 %360
        %v362 = vsub.f32 %v359, %v361
        %v363 = vmul.f32 %v362, 1.442695
        %v364 = vpow.pop %v363
        %365 = vadd.xlane.f32.xlu0 %v364
        %v366 = vpop.xlane.xlu0 %365
        %v367 = vlog2.pop %v366
        %v368 = vmul.f32 %v367, 0.6931472
        %v369 = vmul.f32 %v320, %v362
        %370 = vadd.xlane.f32.xlu0 %v369
        %v371 = vpop.xlane.xlu0 %370
        %v372 = vsub.f32 %v371, %v368
        %v373 = vadd.f32 %v356, %v372
        %v374 = vadd.f32 %v320, %v339
        loop: start=2, step=1, limit=4
        $region45: #{tpu_custom_call.1} parent=35 // loop_pre_header
          _
        $region46: #{tpu_custom_call.1} parent=35 // loop_header
          %s376 = sphi 2, %s380
          %p377 = scmp.ge.s32.totalorder %s376, 4
          %v381 = vphi %v373, %v400
        $region47: #{tpu_custom_call.1} parent=35 // loop_header_branch
          %379 = sbr.rel (%p377) target = $region51
        $region48: #{tpu_custom_call.1} parent=35 // loop_body
          %s382 = smul.u32 %s376, 8
          %s383 = scalar_lea.vmem %s247, %s382 [#allocation3]
          %v384 = vld [vmem:[%s383] sm:$0xff]
          %v385 = vmul.f32 %v384, 10.0
          %386 = vmax.xlane.f32.xlu0 %v385
          %v387 = vpop.xlane.xlu0 %386
          %v388 = vsub.f32 %v385, %v387
          %v389 = vmul.f32 %v388, 1.442695
          %v390 = vpow.pop %v389
          %391 = vadd.xlane.f32.xlu0 %v390
          %v392 = vpop.xlane.xlu0 %391
          %v393 = vlog2.pop %v392
          %v394 = vmul.f32 %v393, 0.6931472
          %v395 = vmul.f32 %v374, %v388
          %396 = vadd.xlane.f32.xlu0 %v395
          %v397 = vpop.xlane.xlu0 %396
          %v398 = vmul.f32 %v394, 2.0
          %v399 = vsub.f32 %v397, %v398
          %v400 = vadd.f32 %v381, %v399
        $region49: #{tpu_custom_call.1} parent=35 // loop_footer
          %s380 = sadd.s32 1, %s376
        $region50: #{tpu_custom_call.1} parent=35 // loop_footer_branch
          %375 = sbr.rel target = $region46
        $region51: #{tpu_custom_call.1} parent=35 // loop_exit
          _
        %vm401 = vcmask 7168
        %v402 = vsel %vm401, %v381, 0.0
        %403 = vadd.xlane.f32.xlu0 %v402
        %v404 = vpop.xlane.xlu0 %403
        %v405 = vrot.slane %v404, 4
        %v406 = vadd.f32 %v404, %v405
        %v407 = vrot.slane %v406, 2
        %v408 = vadd.f32 %v406, %v407
        %v409 = vrot.slane %v408, 1
        %v410 = vadd.f32 %v408, %v409
        %s411 = vtos %v410
        %s412 = ssub.f32 0.0, %s411
        %v413 = vstv %s412
        %414 = vst [vmem:[%s284] sm:$0x1] %v413
        %s415 = sand.u32 %s132, 1
        %s416 = scalar_lea.sflag [#allocation5], %s415
        %s417 = sand.u32 %s132, 1
        %s418 = scalar_lea.vmem [#allocation8], %s417
        %s419 = sand.u32 %s158, 1
        %s420 = scalar_lea.sflag [#allocation10], %s419
        %s421 = sand.u32 %s158, 1
        %s422 = scalar_lea.vmem [#allocation9], %s421
        // Predicated region
        $region52: #{tpu_custom_call.1} parent=35 // pred_check
          %p423 = pneg %p142
        $region53: #{tpu_custom_call.1} parent=35 // pred_check_branch
          %425 = sbr.rel (%p423) target = $region55
        $region54: #{tpu_custom_call.1} parent=35 // pred_region
          %s427 = ssub.s32 16, 16
          %428 = vsyncadd %s416, %s427
          %s429 = smul.addr %s30, 16
          %s430 = scalar_lea.hbm %s4, %s429
          %s432 = sshll.u32 %s418, 4
          %s433 = int_to_ptr.vmem [resolvable:$true] %s432
          %435 = dma.vmem_to_hbm [thread:$0]  %s433, 16, %s430, %s416
        $region55: #{tpu_custom_call.1} parent=35 // pred_fallthru
          _
        // Predicated region
        $region56: #{tpu_custom_call.1} parent=35 // pred_check
          %p436 = pneg %p168
        $region57: #{tpu_custom_call.1} parent=35 // pred_check_branch
          %438 = sbr.rel (%p436) target = $region59
        $region58: #{tpu_custom_call.1} parent=35 // pred_region
          %s440 = ssub.s32 16, 16
          %441 = vsyncadd %s420, %s440
          %s442 = smul.addr %s30, 16
          %s443 = scalar_lea.hbm %s5, %s442
          %s445 = sshll.u32 %s422, 4
          %s446 = int_to_ptr.vmem [resolvable:$true] %s445
          %448 = dma.vmem_to_hbm [thread:$0]  %s446, 16, %s443, %s420
        $region59: #{tpu_custom_call.1} parent=35 // pred_fallthru
          _
      $region36: #{tpu_custom_call.1} parent=5 // pred_fallthru
        _
      %p449 = scmp.le.s32.totalorder 2, %s25
      // Predicated region
      $region60: #{tpu_custom_call.1} parent=5 // pred_check
        %p450 = pneg %p449
      $region61: #{tpu_custom_call.1} parent=5 // pred_check_branch
        %452 = sbr.rel (%p450) target = $region63
      $region62: #{tpu_custom_call.1} parent=5 // pred_region
        %s453 = ssub.s32 %s25, 2
        // Predicated region
        $region64: #{tpu_custom_call.1} parent=62 // pred_check
          %p454 = pneg %p148
        $region65: #{tpu_custom_call.1} parent=62 // pred_check_branch
          %456 = sbr.rel (%p454) target = $region67
        $region66: #{tpu_custom_call.1} parent=62 // pred_region
          %s457 = sand.u32 %s133, 1
          %s458 = scalar_lea.sflag [#allocation5], %s457
          %s459 = sand.u32 %s133, 1
          %s460 = scalar_lea.vmem [#allocation8], %s459
          %461 = dma.done %s458, 16
        $region67: #{tpu_custom_call.1} parent=62 // pred_fallthru
          _
        // Predicated region
        $region68: #{tpu_custom_call.1} parent=62 // pred_check
          %p462 = pneg %p174
        $region69: #{tpu_custom_call.1} parent=62 // pred_check_branch
          %464 = sbr.rel (%p462) target = $region71
        $region70: #{tpu_custom_call.1} parent=62 // pred_region
          %s465 = sand.u32 %s159, 1
          %s466 = scalar_lea.sflag [#allocation10], %s465
          %s467 = sand.u32 %s159, 1
          %s468 = scalar_lea.vmem [#allocation9], %s467
          %469 = dma.done %s466, 16
        $region71: #{tpu_custom_call.1} parent=62 // pred_fallthru
          _
      $region63: #{tpu_custom_call.1} parent=5 // pred_fallthru
        _
    $region6: #{tpu_custom_call.1} parent=1 // loop_footer
      %s29 = sadd.s32 1, %s25
    $region7: #{tpu_custom_call.1} parent=1 // loop_footer_branch
      %24 = sbr.rel target = $region3
    $region8: #{tpu_custom_call.1} parent=1 // loop_exit
      _
    %470 = vsyncpa [#allocation4], 1
    %s471 = scalar_lea.sflag [#allocation4], 1
    %472 = vsyncpa %s471, 1
    %473 = vsyncpa [#allocation7], 1
    %s474 = scalar_lea.sflag [#allocation7], 1
    %475 = vsyncpa %s474, 1
    %476 = vsyncpa [#allocation5], 1
    %s477 = scalar_lea.sflag [#allocation5], 1
    %478 = vsyncpa %s477, 1
    %479 = vsyncpa [#allocation10], 1
    %s480 = scalar_lea.sflag [#allocation10], 1
    %481 = vsyncpa %s480, 1

</llo_original>
